<compile_context>
chip_gen: v7x
topology: tpu7x:2x2x1
jax: 0.10.0
libtpu: 0.0.40
codegen_flags: <defaults>
</compile_context>

<pallas_src>
import functools

import jax
import jax.numpy as jnp
import numpy as np
from jax.experimental import pallas as pl
from jax.experimental.pallas import tpu as pltpu


def _round_up(x, m):
    return ((x + m - 1) // m) * m


# ---------------------------------------------------------------------------
# Full covariance kernel, tiled over the (N1, N2) output grid.
#   params_ref (SMEM, f32[1]) = [log(scale^2)]
#   x1s_ref  : (tm, D)  x1 pre-scaled by -2*gamma
#   x2t_ref  : (D, tn)  x2 transposed (MXU RHS layout, no in-kernel XLU work)
#   sq1g_ref : (tm, 1)  gamma*|x1|^2 + log(s2)
#   sq2g_ref : (1, tn)  gamma*|x2|^2
#   z = gamma*||x1-x2||^2 + log(s2);  clamp at log(s2) (== max(d2, 0)).
# ---------------------------------------------------------------------------
def _rbf_full_kernel(params_ref, x1s_ref, x2t_ref, sq1g_ref, sq2g_ref, o_ref,
                     *, bf16_epilogue):
    logs2 = params_ref[0]
    cross = jnp.dot(x1s_ref[...], x2t_ref[...],
                    preferred_element_type=jnp.float32)          # (tm, tn) MXU
    z = jnp.minimum(sq1g_ref[...] + sq2g_ref[...] + cross, logs2)
    if bf16_epilogue:
        # bf16 EUP exp + bf16 store (v6e/v7x only; no bf16 EUP on v5e).
        o_ref[...] = jnp.exp(z.astype(jnp.bfloat16)).astype(o_ref.dtype)
    else:
        o_ref[...] = jnp.exp(z).astype(o_ref.dtype)


# ---------------------------------------------------------------------------
# Diagonal kernel: paired points, lane-dense (D, t_n) blocks, (1, t_n) output.
#   params_ref (SMEM, f32[2]) = [gamma, s2]
# ---------------------------------------------------------------------------
def _rbf_diag_kernel(params_ref, x1t_ref, x2t_ref, o_ref):
    gamma = params_ref[0]
    s2 = params_ref[1]
    diff = x1t_ref[...] - x2t_ref[...]                           # (D, t_n)
    d2 = jnp.sum(diff * diff, axis=0, keepdims=True)             # (1, t_n)
    o_ref[...] = (s2 * jnp.exp(gamma * d2)).astype(o_ref.dtype)


def rbf_forward(x1, x2, diag=False, *, lengthscale=1.0, scale=1.0,
                tm=512, tn=2048, t_diag=8192,
                out_dtype=jnp.float32, bf16_epilogue=False):
    """Pallas RBF kernel matrix K(x1, x2) or its paired diagonal."""
    x1 = jnp.asarray(x1, jnp.float32)
    x2 = jnp.asarray(x2, jnp.float32)
    n1, d = x1.shape
    n2, d_ = x2.shape
    assert d == d_, "feature dims must match"
    out_dtype = jnp.dtype(out_dtype)

    gamma = -0.5 / (float(lengthscale) ** 2)
    s2 = float(scale) ** 2
    logs2 = float(np.log(s2))

    # ----- diagonal ----------------------------------------------------------
    if diag:
        assert n1 == n2, "diag=True requires x1, x2 with the same number of rows"
        t_n = min(int(t_diag), _round_up(n1, 128))
        params = jnp.array([gamma, s2], dtype=jnp.float32)
        x1t = x1.T                                               # (d, n)
        x2t = x2.T                                               # (d, n)
        out = pl.pallas_call(
            _rbf_diag_kernel,
            out_shape=jax.ShapeDtypeStruct((1, n1), out_dtype),
            grid_spec=pltpu.PrefetchScalarGridSpec(
                num_scalar_prefetch=0,
                grid=(pl.cdiv(n1, t_n),),
                in_specs=[pl.BlockSpec(memory_space=pltpu.MemorySpace.SMEM),
                          pl.BlockSpec((d, t_n), lambda i: (0, i)),
                          pl.BlockSpec((d, t_n), lambda i: (0, i))],
                out_specs=pl.BlockSpec((1, t_n), lambda i: (0, i)),
            ),
            compiler_params=pltpu.CompilerParams(
                dimension_semantics=("parallel",)),
            cost_estimate=pl.CostEstimate(
                flops=3 * n1 * d + 2 * n1,
                transcendentals=n1,
                bytes_accessed=4 * 2 * n1 * d + out_dtype.itemsize * n1),
        )(params, x1t, x2t)
        return out.reshape(n1)

    # ----- full covariance ---------------------------------------------------
    tm = min(int(tm), _round_up(n1, 8))      # sublane-aligned tile
    tn = min(int(tn), _round_up(n2, 128))    # lane-aligned tile

    # One-time wrapper work, O(N*D) << O(N1*N2): constant folding + layouts.
    x1s = x1 * jnp.float32(-2.0 * gamma)                            # (n1, d)
    x2t = x2.T                                                      # (d, n2)
    sq1g = gamma * jnp.sum(x1 * x1, axis=-1, keepdims=True) + logs2  # (n1, 1)
    sq2g = (gamma * jnp.sum(x2 * x2, axis=-1, keepdims=True)).T      # (1, n2)
    params = jnp.array([logs2], dtype=jnp.float32)

    use_bf16_ep = bool(bf16_epilogue) and out_dtype == jnp.bfloat16
    kern = functools.partial(_rbf_full_kernel, bf16_epilogue=use_bf16_ep)

    out = pl.pallas_call(
        kern,
        out_shape=jax.ShapeDtypeStruct((n1, n2), out_dtype),
        grid_spec=pltpu.PrefetchScalarGridSpec(
            num_scalar_prefetch=0,
            grid=(pl.cdiv(n1, tm), pl.cdiv(n2, tn)),
            in_specs=[pl.BlockSpec(memory_space=pltpu.MemorySpace.SMEM),
                      pl.BlockSpec((tm, d), lambda i, j: (i, 0)),
                      pl.BlockSpec((d, tn), lambda i, j: (0, j)),
                      pl.BlockSpec((tm, 1), lambda i, j: (i, 0)),
                      pl.BlockSpec((1, tn), lambda i, j: (0, j))],
            out_specs=pl.BlockSpec((tm, tn), lambda i, j: (i, j)),
        ),
        compiler_params=pltpu.CompilerParams(
            dimension_semantics=("parallel", "parallel")),
        cost_estimate=pl.CostEstimate(
            flops=2 * n1 * n2 * d + 3 * n1 * n2,
            transcendentals=n1 * n2,
            bytes_accessed=4 * (n1 * d + n2 * d + n1 + n2)
                           + out_dtype.itemsize * n1 * n2),
    )(params, x1s, x2t, sq1g, sq2g)
    return out


def _rbf_ref(x1, x2, diag, lengthscale, scale):
    x1 = x1.astype(jnp.float32)
    x2 = x2.astype(jnp.float32)
    if diag:
        d2 = jnp.sum((x1 - x2) ** 2, axis=-1)
    else:
        d2 = (jnp.sum(x1 * x1, -1)[:, None] + jnp.sum(x2 * x2, -1)[None, :]
              - 2.0 * x1 @ x2.T)
        d2 = jnp.maximum(d2, 0.0)
    return (scale * scale) * jnp.exp(-0.5 * d2 / (lengthscale * lengthscale))


if __name__ == "__main__":
    key = jax.random.PRNGKey(0)
    k1, k2, k3, k4 = jax.random.split(key, 4)

    lengthscale, scale = 1.5, 0.8

    # --- full covariance, tile-aligned shapes --------------------------------
    n1, n2, d = 128, 256, 16
    x1 = jax.random.normal(k1, (n1, d), dtype=jnp.float32)
    x2 = jax.random.normal(k2, (n2, d), dtype=jnp.float32)
    k_full = jax.block_until_ready(
        rbf_forward(x1, x2, diag=False, lengthscale=lengthscale, scale=scale))
    ref_full = _rbf_ref(x1, x2, False, lengthscale, scale)
    np.testing.assert_allclose(np.asarray(k_full), np.asarray(ref_full),
                               rtol=1e-4, atol=1e-5)

    # --- full covariance, non-aligned shapes (masked edge blocks, both axes) -
    m1, m2 = 100, 130
    y1 = jax.random.normal(k3, (m1, d), dtype=jnp.float32)
    y2 = jax.random.normal(k4, (m2, d), dtype=jnp.float32)
    k_full2 = jax.block_until_ready(
        rbf_forward(y1, y2, diag=False, lengthscale=lengthscale, scale=scale))
    ref_full2 = _rbf_ref(y1, y2, False, lengthscale, scale)
    np.testing.assert_allclose(np.asarray(k_full2), np.asarray(ref_full2),
                               rtol=1e-4, atol=1e-5)

    # --- opt-in bf16 output (compute in f32, bf16 store) ----------------------
    k_bf16 = jax.block_until_ready(
        rbf_forward(x1, x2, diag=False, lengthscale=lengthscale, scale=scale,
                    out_dtype=jnp.bfloat16))
    np.testing.assert_allclose(np.asarray(k_bf16, dtype=np.float32),
                               np.asarray(ref_full), rtol=1e-2, atol=1e-3)

    # --- diagonal (paired points), aligned and non-aligned -------------------
    k_diag = jax.block_until_ready(
        rbf_forward(x1, x1[::-1], diag=True, lengthscale=lengthscale, scale=scale))
    ref_diag = _rbf_ref(x1, x1[::-1], True, lengthscale, scale)
    np.testing.assert_allclose(np.asarray(k_diag), np.asarray(ref_diag),
                               rtol=1e-4, atol=1e-5)

    k_diag2 = jax.block_until_ready(
        rbf_forward(y1, y1[::-1], diag=True, lengthscale=lengthscale, scale=scale))
    ref_diag2 = _rbf_ref(y1, y1[::-1], True, lengthscale, scale)
    np.testing.assert_allclose(np.asarray(k_diag2), np.asarray(ref_diag2),
                               rtol=1e-4, atol=1e-5)

    print("KERNEL_OK")
</pallas_src>

<mosaic_0001>
module attributes {stable_mosaic.version = 11 : i64} {
  func.func @_rbf_full_kernel(%arg0: i32, %arg1: i32, %arg2: memref<1xf32, #tpu.memory_space<smem>>, %arg3: memref<128x16xf32, #tpu.memory_space<vmem>>, %arg4: memref<16x256xf32, #tpu.memory_space<vmem>>, %arg5: memref<128x1xf32, #tpu.memory_space<vmem>>, %arg6: memref<1x256xf32, #tpu.memory_space<vmem>>, %arg7: memref<128x256xf32, #tpu.memory_space<vmem>>) attributes {dimension_semantics = [#tpu.dimension_semantics<parallel>, #tpu.dimension_semantics<parallel>], iteration_bounds = array<i64: 1, 1>, scalar_prefetch = 0 : i64, scratch_operands = 0 : i64, tpu.core_type = #tpu.core_type<tc>, window_params = [{transform_indices = @transform_0, window_bounds = array<i64: 1>}, {transform_indices = @transform_1, window_bounds = array<i64: 128, 16>}, {transform_indices = @transform_2, window_bounds = array<i64: 16, 256>}, {transform_indices = @transform_3, window_bounds = array<i64: 128, 1>}, {transform_indices = @transform_4, window_bounds = array<i64: 1, 256>}, {transform_indices = @transform_5, window_bounds = array<i64: 128, 256>}]} {
    %c0 = arith.constant 0 : index
    %0 = memref.load %arg2[%c0] : memref<1xf32, #tpu.memory_space<smem>>
    %c0_0 = arith.constant 0 : index
    %c0_1 = arith.constant 0 : index
    %1 = vector.load %arg3[%c0_0, %c0_1] : memref<128x16xf32, #tpu.memory_space<vmem>>, vector<128x16xf32>
    %c0_2 = arith.constant 0 : index
    %c0_3 = arith.constant 0 : index
    %2 = vector.load %arg4[%c0_2, %c0_3] : memref<16x256xf32, #tpu.memory_space<vmem>>, vector<16x256xf32>
    %cst = arith.constant dense<0.000000e+00> : vector<128x256xf32>
    %3 = tpu.matmul %1, %2, %cst {dimension_numbers = #tpu.dot_dimension_numbers<[1], [0], [0], [1], [0, 0, 1, 1], [], []>} : vector<128x16xf32>, vector<16x256xf32>, vector<128x256xf32> -> vector<128x256xf32>
    %c0_4 = arith.constant 0 : index
    %c0_5 = arith.constant 0 : index
    %4 = vector.load %arg5[%c0_4, %c0_5] : memref<128x1xf32, #tpu.memory_space<vmem>>, vector<128x1xf32>
    %c0_6 = arith.constant 0 : index
    %c0_7 = arith.constant 0 : index
    %5 = vector.load %arg6[%c0_6, %c0_7] : memref<1x256xf32, #tpu.memory_space<vmem>>, vector<1x256xf32>
    %6 = vector.broadcast %4 : vector<128x1xf32> to vector<128x256xf32>
    %7 = vector.broadcast %5 : vector<1x256xf32> to vector<128x256xf32>
    %8 = arith.addf %6, %7 : vector<128x256xf32>
    %9 = arith.addf %8, %3 : vector<128x256xf32>
    %10 = vector.broadcast %0 : f32 to vector<128x256xf32>
    %11 = arith.minimumf %9, %10 : vector<128x256xf32>
    %12 = math.exp %11 : vector<128x256xf32>
    %c0_8 = arith.constant 0 : index
    %c0_9 = arith.constant 0 : index
    %13 = vector.load %arg7[%c0_8, %c0_9] : memref<128x256xf32, #tpu.memory_space<vmem>>, vector<128x256xf32>
    tpu.vector_store %arg7[%c0_8, %c0_9], %12 {strides = array<i32>} : memref<128x256xf32, #tpu.memory_space<vmem>>, vector<128x256xf32>,
    return
  }
  func.func @transform_0(%arg0: i32, %arg1: i32) -> i32 {
    %c0_i32 = arith.constant 0 : i32
    %c0_i32_0 = arith.constant 0 : i32
    return %c0_i32 : i32
  }
  func.func @transform_1(%arg0: i32, %arg1: i32) -> (i32, i32) {
    %c0_i32 = arith.constant 0 : i32
    %c0_i32_0 = arith.constant 0 : i32
    return %arg0, %c0_i32 : i32, i32
  }
  func.func @transform_2(%arg0: i32, %arg1: i32) -> (i32, i32) {
    %c0_i32 = arith.constant 0 : i32
    %c0_i32_0 = arith.constant 0 : i32
    return %c0_i32, %arg1 : i32, i32
  }
  func.func @transform_3(%arg0: i32, %arg1: i32) -> (i32, i32) {
    %c0_i32 = arith.constant 0 : i32
    %c0_i32_0 = arith.constant 0 : i32
    return %arg0, %c0_i32 : i32, i32
  }
  func.func @transform_4(%arg0: i32, %arg1: i32) -> (i32, i32) {
    %c0_i32 = arith.constant 0 : i32
    %c0_i32_0 = arith.constant 0 : i32
    return %c0_i32, %arg1 : i32, i32
  }
  func.func @transform_5(%arg0: i32, %arg1: i32) -> (i32, i32) {
    %c0_i32 = arith.constant 0 : i32
    return %arg0, %arg1 : i32, i32
  }
}

</mosaic_0001>

<llo_original>
// kernel: tpu_custom_call.1
$region0: #{tpu_custom_call.1}
  #allocation0 [shape = 'u32[]', space=smem, size = 0x4, offset = 0x4, fixed_abs, tag = 'smem constant byte address 0x4 - core index']
  #allocation1 [shape = 'u32[144,128]{1,0:T(1,128)}', space=vmem, size = 0x12000, scoped, tag = 'internal scratch']
  #allocation2 [shape = 'f32[1]{0:T(128)S(6)}', space=smem, size = 0x200, scoped, tag = 'scoped memory for tpu_custom_call.1']
  %s0 = inlined_call_operand.<no memory space> [shape: f32[1], index: 0, kind: input, shape index: {}]
  %s1 = inlined_call_operand.vmem [shape: f32[128,16], index: 1, kind: input, shape index: {}]
  %s2 = inlined_call_operand.vmem [shape: f32[16,256], index: 2, kind: input, shape index: {}]
  %s3 = inlined_call_operand.vmem [shape: f32[128,1], index: 3, kind: input, shape index: {}]
  %s4 = inlined_call_operand.vmem [shape: f32[1,256], index: 4, kind: input, shape index: {}]
  %s5 = inlined_call_operand.hbm [shape: f32[128,256], index: 5, kind: output, shape index: {}]
  %s6 = sld [smem:[#allocation0]]
  $region30: #{tpu_custom_call.1} parent=0
    _
  %s8 = ssub.s32 1, %s6
  %s9 = scalar_select 0, %s8, %s6
  %10 = sst [smem:[#allocation2]] %s0
  $region1: #{tpu_custom_call.1} parent=0
    #allocation3 [shape = 'u8[131072]{0}', space=vmem, size = 0x20000, scoped, tag = 'output window, operand 0, single buffered']
    #allocation4 [shape = 's32[1]{0}', space=sflag, size = 0x4, scoped, tag = 'scoped memory for tpu_custom_call.1']
    %11 = vsyncpa [#allocation4], 0
    // Predicated region
    $region2: #{tpu_custom_call.1} parent=1 // pred_check
      _
    $region3: #{tpu_custom_call.1} parent=1 // pred_check_branch
      %13 = sbr.rel (0) target = $region5
    $region4: #{tpu_custom_call.1} parent=1 // pred_region
      _
    $region5: #{tpu_custom_call.1} parent=1 // pred_fallthru
      _
    // Predicated region
    $region6: #{tpu_custom_call.1} parent=1 // pred_check
      _
    $region7: #{tpu_custom_call.1} parent=1 // pred_check_branch
      %15 = sbr.rel (0) target = $region9
    $region8: #{tpu_custom_call.1} parent=1 // pred_region
      _
    $region9: #{tpu_custom_call.1} parent=1 // pred_fallthru
      _
    // Predicated region
    $region10: #{tpu_custom_call.1} parent=1 // pred_check
      _
    $region11: #{tpu_custom_call.1} parent=1 // pred_check_branch
      %17 = sbr.rel (0) target = $region13
    $region12: #{tpu_custom_call.1} parent=1 // pred_region
      _
    $region13: #{tpu_custom_call.1} parent=1 // pred_fallthru
      _
    // Predicated region
    $region14: #{tpu_custom_call.1} parent=1 // pred_check
      _
    $region15: #{tpu_custom_call.1} parent=1 // pred_check_branch
      %19 = sbr.rel (0) target = $region17
    $region16: #{tpu_custom_call.1} parent=1 // pred_region
      _
    $region17: #{tpu_custom_call.1} parent=1 // pred_fallthru
      _
    // Predicated region
    $region18: #{tpu_custom_call.1} parent=1 // pred_check
      _
    $region19: #{tpu_custom_call.1} parent=1 // pred_check_branch
      %21 = sbr.rel (0) target = $region21
    $region20: #{tpu_custom_call.1} parent=1 // pred_region
      _
    $region21: #{tpu_custom_call.1} parent=1 // pred_fallthru
      _
    %s22 = sld [smem:[#allocation2]]
    %v23 = vld [vmem:[%s1] sm:$0xff]
    %v24 = vld [vmem:[%s1 + $0x8] sm:$0xff]
    %v25 = vld [vmem:[%s1 + $0x10] sm:$0xff]
    %v26 = vld [vmem:[%s1 + $0x18] sm:$0xff]
    %v27 = vld [vmem:[%s1 + $0x20] sm:$0xff]
    %v28 = vld [vmem:[%s1 + $0x28] sm:$0xff]
    %v29 = vld [vmem:[%s1 + $0x30] sm:$0xff]
    %v30 = vld [vmem:[%s1 + $0x38] sm:$0xff]
    %v31 = vld [vmem:[%s1 + $0x40] sm:$0xff]
    %v32 = vld [vmem:[%s1 + $0x48] sm:$0xff]
    %v33 = vld [vmem:[%s1 + $0x50] sm:$0xff]
    %v34 = vld [vmem:[%s1 + $0x58] sm:$0xff]
    %v35 = vld [vmem:[%s1 + $0x60] sm:$0xff]
    %v36 = vld [vmem:[%s1 + $0x68] sm:$0xff]
    %v37 = vld [vmem:[%s1 + $0x70] sm:$0xff]
    %v38 = vld [vmem:[%s1 + $0x78] sm:$0xff]
    %v39 = vld [vmem:[%s2] sm:$0xff]
    %v40 = vld [vmem:[%s2 + $0x8] sm:$0xff]
    %v41 = vld [vmem:[%s2 + $0x10] sm:$0xff]
    %v42 = vld [vmem:[%s2 + $0x18] sm:$0xff]
    %vm43 = vcmask 130048
    %v45 = vsel %vm43, %v23, 0
    %v48 = vsel %vm43, %v24, 0
    %v51 = vsel %vm43, %v25, 0
    %v54 = vsel %vm43, %v26, 0
    %v57 = vsel %vm43, %v27, 0
    %v60 = vsel %vm43, %v28, 0
    %v63 = vsel %vm43, %v29, 0
    %v66 = vsel %vm43, %v30, 0
    %v69 = vsel %vm43, %v31, 0
    %v72 = vsel %vm43, %v32, 0
    %v75 = vsel %vm43, %v33, 0
    %v78 = vsel %vm43, %v34, 0
    %v81 = vsel %vm43, %v35, 0
    %v84 = vsel %vm43, %v36, 0
    %v87 = vsel %vm43, %v37, 0
    %v90 = vsel %vm43, %v38, 0
    %92 = vmatprep.subr.mxu0 %v40
    %93 = vmatpush1.msra.mxu0 %v39
    %94 = vmatprep.subr.mxu0 %v42
    %95 = vmatpush1.msra.mxu0 %v41
    %96 = vmatprep.subr.mxu0 0.0
    %97 = vmatpush1.msra.mxu0 0.0
    %98 = vmatprep.subr.mxu0 0.0
    %99 = vmatpush1.msra.mxu0 0.0
    %100 = vmatprep.subr.mxu0 0.0
    %101 = vmatpush1.msra.mxu0 0.0
    %102 = vmatprep.subr.mxu0 0.0
    %103 = vmatpush1.msra.mxu0 0.0
    %104 = vmatprep.subr.mxu0 0.0
    %105 = vmatpush1.msra.mxu0 0.0
    %106 = vmatprep.subr.mxu0 0.0
    %107 = vmatpush1.msra.mxu0 0.0
    %108 = vmatprep.subr.mxu0 0.0
    %109 = vmatpush1.msra.mxu0 0.0
    %110 = vmatprep.subr.mxu0 0.0
    %111 = vmatpush1.msra.mxu0 0.0
    %112 = vmatprep.subr.mxu0 0.0
    %113 = vmatpush1.msra.mxu0 0.0
    %114 = vmatprep.subr.mxu0 0.0
    %115 = vmatpush1.msra.mxu0 0.0
    %116 = vmatprep.subr.mxu0 0.0
    %117 = vmatpush1.msra.mxu0 0.0
    %118 = vmatprep.subr.mxu0 0.0
    %119 = vmatpush1.msra.mxu0 0.0
    %120 = vmatprep.subr.mxu0 0.0
    %121 = vmatpush1.msra.mxu0 0.0
    %122 = vmatprep.subr.mxu0 0.0
    %123 = vmatpush1.msra.mxu0 0.0
    %124 = vmatprep.subr.mxu0 0.0
    %125 = vmatpush1.msra.mxu0 0.0
    %126 = vmatprep.subr.mxu0 0.0
    %127 = vmatpush1.msra.mxu0 0.0
    %128 = vmatprep.subr.mxu0 0.0
    %129 = vmatpush1.msra.mxu0 0.0
    %130 = vmatprep.subr.mxu0 0.0
    %131 = vmatpush1.msra.mxu0 0.0
    %132 = vmatprep.subr.mxu0 0.0
    %133 = vmatpush1.msra.mxu0 0.0
    %134 = vmatprep.subr.mxu0 0.0
    %135 = vmatpush1.msra.mxu0 0.0
    %136 = vmatprep.subr.mxu0 0.0
    %137 = vmatpush1.msra.mxu0 0.0
    %138 = vmatprep.subr.mxu0 0.0
    %139 = vmatpush1.msra.mxu0 0.0
    %140 = vmatprep.subr.mxu0 0.0
    %141 = vmatpush1.msra.mxu0 0.0
    %142 = vmatprep.subr.mxu0 0.0
    %143 = vmatpush1.msra.mxu0 0.0
    %144 = vmatprep.subr.mxu0 0.0
    %145 = vmatpush1.msra.mxu0 0.0
    %146 = vmatprep.subr.mxu0 0.0
    %147 = vmatpush1.msra.mxu0 0.0
    %148 = vmatprep.subr.mxu0 0.0
    %149 = vmatpush1.msra.mxu0 0.0
    %150 = vmatprep.subr.mxu0 0.0
    %151 = vmatpush1.msra.mxu0 0.0
    %152 = vmatprep.subr.mxu0 0.0
    %153 = vmatpush1.msra.mxu0 0.0
    %154 = vmatprep.subr.mxu0 0.0
    %155 = vmatpush1.msra.mxu0 0.0
    %156 = vmatprep.mubr.f32.mxu0 0.0
    %157 = vmatmul.mubr.f32.gmra.mrb[0].mxu0 %v45
    %v158 = vpop.f32.mrb[0].mxu0
    %v159 = vadd.f32 0.0, %v158
    %v160 = vpop.f32.mrb[0].mxu0
    %v161 = vadd.f32 0.0, %v160
    %162 = vmatprep.mubr.f32.mxu0 0.0
    %163 = vmatmul.mubr.f32.gmra.mrb[0].mxu0 %v48
    %v164 = vpop.f32.mrb[0].mxu0
    %v165 = vadd.f32 0.0, %v164
    %v166 = vpop.f32.mrb[0].mxu0
    %v167 = vadd.f32 0.0, %v166
    %168 = vmatprep.mubr.f32.mxu0 0.0
    %169 = vmatmul.mubr.f32.gmra.mrb[0].mxu0 %v51
    %v170 = vpop.f32.mrb[0].mxu0
    %v171 = vadd.f32 0.0, %v170
    %v172 = vpop.f32.mrb[0].mxu0
    %v173 = vadd.f32 0.0, %v172
    %174 = vmatprep.mubr.f32.mxu0 0.0
    %175 = vmatmul.mubr.f32.gmra.mrb[0].mxu0 %v54
    %v176 = vpop.f32.mrb[0].mxu0
    %v177 = vadd.f32 0.0, %v176
    %v178 = vpop.f32.mrb[0].mxu0
    %v179 = vadd.f32 0.0, %v178
    %180 = vmatprep.mubr.f32.mxu0 0.0
    %181 = vmatmul.mubr.f32.gmra.mrb[0].mxu0 %v57
    %v182 = vpop.f32.mrb[0].mxu0
    %v183 = vadd.f32 0.0, %v182
    %v184 = vpop.f32.mrb[0].mxu0
    %v185 = vadd.f32 0.0, %v184
    %186 = vmatprep.mubr.f32.mxu0 0.0
    %187 = vmatmul.mubr.f32.gmra.mrb[0].mxu0 %v60
    %v188 = vpop.f32.mrb[0].mxu0
    %v189 = vadd.f32 0.0, %v188
    %v190 = vpop.f32.mrb[0].mxu0
    %v191 = vadd.f32 0.0, %v190
    %192 = vmatprep.mubr.f32.mxu0 0.0
    %193 = vmatmul.mubr.f32.gmra.mrb[0].mxu0 %v63
    %v194 = vpop.f32.mrb[0].mxu0
    %v195 = vadd.f32 0.0, %v194
    %v196 = vpop.f32.mrb[0].mxu0
    %v197 = vadd.f32 0.0, %v196
    %198 = vmatprep.mubr.f32.mxu0 0.0
    %199 = vmatmul.mubr.f32.gmra.mrb[0].mxu0 %v66
    %v200 = vpop.f32.mrb[0].mxu0
    %v201 = vadd.f32 0.0, %v200
    %v202 = vpop.f32.mrb[0].mxu0
    %v203 = vadd.f32 0.0, %v202
    %204 = vmatprep.mubr.f32.mxu0 0.0
    %205 = vmatmul.mubr.f32.gmra.mrb[0].mxu0 %v69
    %v206 = vpop.f32.mrb[0].mxu0
    %v207 = vadd.f32 0.0, %v206
    %v208 = vpop.f32.mrb[0].mxu0
    %v209 = vadd.f32 0.0, %v208
    %210 = vmatprep.mubr.f32.mxu0 0.0
    %211 = vmatmul.mubr.f32.gmra.mrb[0].mxu0 %v72
    %v212 = vpop.f32.mrb[0].mxu0
    %v213 = vadd.f32 0.0, %v212
    %v214 = vpop.f32.mrb[0].mxu0
    %v215 = vadd.f32 0.0, %v214
    %216 = vmatprep.mubr.f32.mxu0 0.0
    %217 = vmatmul.mubr.f32.gmra.mrb[0].mxu0 %v75
    %v218 = vpop.f32.mrb[0].mxu0
    %v219 = vadd.f32 0.0, %v218
    %v220 = vpop.f32.mrb[0].mxu0
    %v221 = vadd.f32 0.0, %v220
    %222 = vmatprep.mubr.f32.mxu0 0.0
    %223 = vmatmul.mubr.f32.gmra.mrb[0].mxu0 %v78
    %v224 = vpop.f32.mrb[0].mxu0
    %v225 = vadd.f32 0.0, %v224
    %v226 = vpop.f32.mrb[0].mxu0
    %v227 = vadd.f32 0.0, %v226
    %228 = vmatprep.mubr.f32.mxu0 0.0
    %229 = vmatmul.mubr.f32.gmra.mrb[0].mxu0 %v81
    %v230 = vpop.f32.mrb[0].mxu0
    %v231 = vadd.f32 0.0, %v230
    %v232 = vpop.f32.mrb[0].mxu0
    %v233 = vadd.f32 0.0, %v232
    %234 = vmatprep.mubr.f32.mxu0 0.0
    %235 = vmatmul.mubr.f32.gmra.mrb[0].mxu0 %v84
    %v236 = vpop.f32.mrb[0].mxu0
    %v237 = vadd.f32 0.0, %v236
    %v238 = vpop.f32.mrb[0].mxu0
    %v239 = vadd.f32 0.0, %v238
    %240 = vmatprep.mubr.f32.mxu0 0.0
    %241 = vmatmul.mubr.f32.gmra.mrb[0].mxu0 %v87
    %v242 = vpop.f32.mrb[0].mxu0
    %v243 = vadd.f32 0.0, %v242
    %v244 = vpop.f32.mrb[0].mxu0
    %v245 = vadd.f32 0.0, %v244
    %246 = vmatprep.mubr.f32.mxu0 0.0
    %247 = vmatmul.mubr.f32.gmra.mrb[0].mxu0 %v90
    %v248 = vpop.f32.mrb[0].mxu0
    %v249 = vadd.f32 0.0, %v248
    %v250 = vpop.f32.mrb[0].mxu0
    %v251 = vadd.f32 0.0, %v250
    %252 = vdwg.mxu0
    %v253 = vld [vmem:[%s3] sm:$0xff]
    %v254 = vld [vmem:[%s3 + $0x8] sm:$0xff]
    %v255 = vld [vmem:[%s3 + $0x10] sm:$0xff]
    %v256 = vld [vmem:[%s3 + $0x18] sm:$0xff]
    %v257 = vld [vmem:[%s3 + $0x20] sm:$0xff]
    %v258 = vld [vmem:[%s3 + $0x28] sm:$0xff]
    %v259 = vld [vmem:[%s3 + $0x30] sm:$0xff]
    %v260 = vld [vmem:[%s3 + $0x38] sm:$0xff]
    %v261 = vld [vmem:[%s3 + $0x40] sm:$0xff]
    %v262 = vld [vmem:[%s3 + $0x48] sm:$0xff]
    %v263 = vld [vmem:[%s3 + $0x50] sm:$0xff]
    %v264 = vld [vmem:[%s3 + $0x58] sm:$0xff]
    %v265 = vld [vmem:[%s3 + $0x60] sm:$0xff]
    %v266 = vld [vmem:[%s3 + $0x68] sm:$0xff]
    %v267 = vld [vmem:[%s3 + $0x70] sm:$0xff]
    %v268 = vld [vmem:[%s3 + $0x78] sm:$0xff]
    %v269 = vld [vmem:[%s4] sm:$0x3]
    %271 = vset.pattern.permute.xlu0 0
    %272 = vperm.xlu0 %271, %v253
    %v273 = vpop.permute.xlu0 %272
    %276 = vset.pattern.permute.xlu0 0
    %277 = vperm.xlu0 %276, %v254
    %v278 = vpop.permute.xlu0 %277
    %281 = vset.pattern.permute.xlu0 0
    %282 = vperm.xlu0 %281, %v255
    %v283 = vpop.permute.xlu0 %282
    %286 = vset.pattern.permute.xlu0 0
    %287 = vperm.xlu0 %286, %v256
    %v288 = vpop.permute.xlu0 %287
    %291 = vset.pattern.permute.xlu0 0
    %292 = vperm.xlu0 %291, %v257
    %v293 = vpop.permute.xlu0 %292
    %296 = vset.pattern.permute.xlu0 0
    %297 = vperm.xlu0 %296, %v258
    %v298 = vpop.permute.xlu0 %297
    %301 = vset.pattern.permute.xlu0 0
    %302 = vperm.xlu0 %301, %v259
    %v303 = vpop.permute.xlu0 %302
    %306 = vset.pattern.permute.xlu0 0
    %307 = vperm.xlu0 %306, %v260
    %v308 = vpop.permute.xlu0 %307
    %311 = vset.pattern.permute.xlu0 0
    %312 = vperm.xlu0 %311, %v261
    %v313 = vpop.permute.xlu0 %312
    %316 = vset.pattern.permute.xlu0 0
    %317 = vperm.xlu0 %316, %v262
    %v318 = vpop.permute.xlu0 %317
    %321 = vset.pattern.permute.xlu0 0
    %322 = vperm.xlu0 %321, %v263
    %v323 = vpop.permute.xlu0 %322
    %326 = vset.pattern.permute.xlu0 0
    %327 = vperm.xlu0 %326, %v264
    %v328 = vpop.permute.xlu0 %327
    %331 = vset.pattern.permute.xlu0 0
    %332 = vperm.xlu0 %331, %v265
    %v333 = vpop.permute.xlu0 %332
    %336 = vset.pattern.permute.xlu0 0
    %337 = vperm.xlu0 %336, %v266
    %v338 = vpop.permute.xlu0 %337
    %341 = vset.pattern.permute.xlu0 0
    %342 = vperm.xlu0 %341, %v267
    %v343 = vpop.permute.xlu0 %342
    %346 = vset.pattern.permute.xlu0 0
    %347 = vperm.xlu0 %346, %v268
    %v348 = vpop.permute.xlu0 %347
    %v351 = vlaneseq
    %v352 = vshrl.u32 %v351, 7
    %v353 = vsub.s32 0, %v352
    %v354 = vrot.slane %v269, %v353
    %v355 = vlaneseq
    %v356 = vshrl.u32 %v355, 7
    %v357 = vsub.s32 1, %v356
    %v358 = vrot.slane %v269, %v357
    %v361 = vadd.f32 %v273, %v354
    %v362 = vadd.f32 %v273, %v358
    %v363 = vadd.f32 %v278, %v354
    %v364 = vadd.f32 %v278, %v358
    %v365 = vadd.f32 %v283, %v354
    %v366 = vadd.f32 %v283, %v358
    %v367 = vadd.f32 %v288, %v354
    %v368 = vadd.f32 %v288, %v358
    %v369 = vadd.f32 %v293, %v354
    %v370 = vadd.f32 %v293, %v358
    %v371 = vadd.f32 %v298, %v354
    %v372 = vadd.f32 %v298, %v358
    %v373 = vadd.f32 %v303, %v354
    %v374 = vadd.f32 %v303, %v358
    %v375 = vadd.f32 %v308, %v354
    %v376 = vadd.f32 %v308, %v358
    %v377 = vadd.f32 %v313, %v354
    %v378 = vadd.f32 %v313, %v358
    %v379 = vadd.f32 %v318, %v354
    %v380 = vadd.f32 %v318, %v358
    %v381 = vadd.f32 %v323, %v354
    %v382 = vadd.f32 %v323, %v358
    %v383 = vadd.f32 %v328, %v354
    %v384 = vadd.f32 %v328, %v358
    %v385 = vadd.f32 %v333, %v354
    %v386 = vadd.f32 %v333, %v358
    %v387 = vadd.f32 %v338, %v354
    %v388 = vadd.f32 %v338, %v358
    %v389 = vadd.f32 %v343, %v354
    %v390 = vadd.f32 %v343, %v358
    %v391 = vadd.f32 %v348, %v354
    %v392 = vadd.f32 %v348, %v358
    %v393 = vadd.f32 %v361, %v159
    %v394 = vadd.f32 %v362, %v161
    %v395 = vadd.f32 %v363, %v165
    %v396 = vadd.f32 %v364, %v167
    %v397 = vadd.f32 %v365, %v171
    %v398 = vadd.f32 %v366, %v173
    %v399 = vadd.f32 %v367, %v177
    %v400 = vadd.f32 %v368, %v179
    %v401 = vadd.f32 %v369, %v183
    %v402 = vadd.f32 %v370, %v185
    %v403 = vadd.f32 %v371, %v189
    %v404 = vadd.f32 %v372, %v191
    %v405 = vadd.f32 %v373, %v195
    %v406 = vadd.f32 %v374, %v197
    %v407 = vadd.f32 %v375, %v201
    %v408 = vadd.f32 %v376, %v203
    %v409 = vadd.f32 %v377, %v207
    %v410 = vadd.f32 %v378, %v209
    %v411 = vadd.f32 %v379, %v213
    %v412 = vadd.f32 %v380, %v215
    %v413 = vadd.f32 %v381, %v219
    %v414 = vadd.f32 %v382, %v221
    %v415 = vadd.f32 %v383, %v225
    %v416 = vadd.f32 %v384, %v227
    %v417 = vadd.f32 %v385, %v231
    %v418 = vadd.f32 %v386, %v233
    %v419 = vadd.f32 %v387, %v237
    %v420 = vadd.f32 %v388, %v239
    %v421 = vadd.f32 %v389, %v243
    %v422 = vadd.f32 %v390, %v245
    %v423 = vadd.f32 %v391, %v249
    %v424 = vadd.f32 %v392, %v251
    %v425 = vstv %s22
    %v426 = vmin.f32 %v393, %v425
    %v427 = vmin.f32 %v394, %v425
    %v428 = vmin.f32 %v395, %v425
    %v429 = vmin.f32 %v396, %v425
    %v430 = vmin.f32 %v397, %v425
    %v431 = vmin.f32 %v398, %v425
    %v432 = vmin.f32 %v399, %v425
    %v433 = vmin.f32 %v400, %v425
    %v434 = vmin.f32 %v401, %v425
    %v435 = vmin.f32 %v402, %v425
    %v436 = vmin.f32 %v403, %v425
    %v437 = vmin.f32 %v404, %v425
    %v438 = vmin.f32 %v405, %v425
    %v439 = vmin.f32 %v406, %v425
    %v440 = vmin.f32 %v407, %v425
    %v441 = vmin.f32 %v408, %v425
    %v442 = vmin.f32 %v409, %v425
    %v443 = vmin.f32 %v410, %v425
    %v444 = vmin.f32 %v411, %v425
    %v445 = vmin.f32 %v412, %v425
    %v446 = vmin.f32 %v413, %v425
    %v447 = vmin.f32 %v414, %v425
    %v448 = vmin.f32 %v415, %v425
    %v449 = vmin.f32 %v416, %v425
    %v450 = vmin.f32 %v417, %v425
    %v451 = vmin.f32 %v418, %v425
    %v452 = vmin.f32 %v419, %v425
    %v453 = vmin.f32 %v420, %v425
    %v454 = vmin.f32 %v421, %v425
    %v455 = vmin.f32 %v422, %v425
    %v456 = vmin.f32 %v423, %v425
    %v457 = vmin.f32 %v424, %v425
    %v458 = vmul.f32 %v426, 1.442695
    %v459 = vpow.pop %v458
    %v460 = vmul.f32 %v427, 1.442695
    %v461 = vpow.pop %v460
    %v462 = vmul.f32 %v428, 1.442695
    %v463 = vpow.pop %v462
    %v464 = vmul.f32 %v429, 1.442695
    %v465 = vpow.pop %v464
    %v466 = vmul.f32 %v430, 1.442695
    %v467 = vpow.pop %v466
    %v468 = vmul.f32 %v431, 1.442695
    %v469 = vpow.pop %v468
    %v470 = vmul.f32 %v432, 1.442695
    %v471 = vpow.pop %v470
    %v472 = vmul.f32 %v433, 1.442695
    %v473 = vpow.pop %v472
    %v474 = vmul.f32 %v434, 1.442695
    %v475 = vpow.pop %v474
    %v476 = vmul.f32 %v435, 1.442695
    %v477 = vpow.pop %v476
    %v478 = vmul.f32 %v436, 1.442695
    %v479 = vpow.pop %v478
    %v480 = vmul.f32 %v437, 1.442695
    %v481 = vpow.pop %v480
    %v482 = vmul.f32 %v438, 1.442695
    %v483 = vpow.pop %v482
    %v484 = vmul.f32 %v439, 1.442695
    %v485 = vpow.pop %v484
    %v486 = vmul.f32 %v440, 1.442695
    %v487 = vpow.pop %v486
    %v488 = vmul.f32 %v441, 1.442695
    %v489 = vpow.pop %v488
    %v490 = vmul.f32 %v442, 1.442695
    %v491 = vpow.pop %v490
    %v492 = vmul.f32 %v443, 1.442695
    %v493 = vpow.pop %v492
    %v494 = vmul.f32 %v444, 1.442695
    %v495 = vpow.pop %v494
    %v496 = vmul.f32 %v445, 1.442695
    %v497 = vpow.pop %v496
    %v498 = vmul.f32 %v446, 1.442695
    %v499 = vpow.pop %v498
    %v500 = vmul.f32 %v447, 1.442695
    %v501 = vpow.pop %v500
    %v502 = vmul.f32 %v448, 1.442695
    %v503 = vpow.pop %v502
    %v504 = vmul.f32 %v449, 1.442695
    %v505 = vpow.pop %v504
    %v506 = vmul.f32 %v450, 1.442695
    %v507 = vpow.pop %v506
    %v508 = vmul.f32 %v451, 1.442695
    %v509 = vpow.pop %v508
    %v510 = vmul.f32 %v452, 1.442695
    %v511 = vpow.pop %v510
    %v512 = vmul.f32 %v453, 1.442695
    %v513 = vpow.pop %v512
    %v514 = vmul.f32 %v454, 1.442695
    %v515 = vpow.pop %v514
    %v516 = vmul.f32 %v455, 1.442695
    %v517 = vpow.pop %v516
    %v518 = vmul.f32 %v456, 1.442695
    %v519 = vpow.pop %v518
    %v520 = vmul.f32 %v457, 1.442695
    %v521 = vpow.pop %v520
    %522 = vst [vmem:[#allocation3] sm:$0xff] %v459
    %523 = vst [vmem:[#allocation3 + $0x8] sm:$0xff] %v461
    %524 = vst [vmem:[#allocation3 + $0x10] sm:$0xff] %v463
    %525 = vst [vmem:[#allocation3 + $0x18] sm:$0xff] %v465
    %526 = vst [vmem:[#allocation3 + $0x20] sm:$0xff] %v467
    %527 = vst [vmem:[#allocation3 + $0x28] sm:$0xff] %v469
    %528 = vst [vmem:[#allocation3 + $0x30] sm:$0xff] %v471
    %529 = vst [vmem:[#allocation3 + $0x38] sm:$0xff] %v473
    %530 = vst [vmem:[#allocation3 + $0x40] sm:$0xff] %v475
    %531 = vst [vmem:[#allocation3 + $0x48] sm:$0xff] %v477
    %532 = vst [vmem:[#allocation3 + $0x50] sm:$0xff] %v479
    %533 = vst [vmem:[#allocation3 + $0x58] sm:$0xff] %v481
    %534 = vst [vmem:[#allocation3 + $0x60] sm:$0xff] %v483
    %535 = vst [vmem:[#allocation3 + $0x68] sm:$0xff] %v485
    %536 = vst [vmem:[#allocation3 + $0x70] sm:$0xff] %v487
    %537 = vst [vmem:[#allocation3 + $0x78] sm:$0xff] %v489
    %538 = vst [vmem:[#allocation3 + $0x80] sm:$0xff] %v491
    %539 = vst [vmem:[#allocation3 + $0x88] sm:$0xff] %v493
    %540 = vst [vmem:[#allocation3 + $0x90] sm:$0xff] %v495
    %541 = vst [vmem:[#allocation3 + $0x98] sm:$0xff] %v497
    %542 = vst [vmem:[#allocation3 + $0xa0] sm:$0xff] %v499
    %543 = vst [vmem:[#allocation3 + $0xa8] sm:$0xff] %v501
    %544 = vst [vmem:[#allocation3 + $0xb0] sm:$0xff] %v503
    %545 = vst [vmem:[#allocation3 + $0xb8] sm:$0xff] %v505
    %546 = vst [vmem:[#allocation3 + $0xc0] sm:$0xff] %v507
    %547 = vst [vmem:[#allocation3 + $0xc8] sm:$0xff] %v509
    %548 = vst [vmem:[#allocation3 + $0xd0] sm:$0xff] %v511
    %549 = vst [vmem:[#allocation3 + $0xd8] sm:$0xff] %v513
    %550 = vst [vmem:[#allocation3 + $0xe0] sm:$0xff] %v515
    %551 = vst [vmem:[#allocation3 + $0xe8] sm:$0xff] %v517
    %552 = vst [vmem:[#allocation3 + $0xf0] sm:$0xff] %v519
    %553 = vst [vmem:[#allocation3 + $0xf8] sm:$0xff] %v521
    // Predicated region
    $region22: #{tpu_custom_call.1} parent=1 // pred_check
      _
    $region23: #{tpu_custom_call.1} parent=1 // pred_check_branch
      %555 = sbr.rel (0) target = $region25
    $region24: #{tpu_custom_call.1} parent=1 // pred_region
      %s557 = ssub.s32 4096, 4096
      %558 = vsyncadd [#allocation4], %s557
      %s559 = sshll.u32 [#allocation3], 4
      %s560 = int_to_ptr.vmem [resolvable:$true] %s559
      %565 = dma.vmem_to_hbm [thread:$0]  %s560, 4096, %s5, [#allocation4], 256, 256, 16
    $region25: #{tpu_custom_call.1} parent=1 // pred_fallthru
      _
    // Predicated region
    $region26: #{tpu_custom_call.1} parent=1 // pred_check
      _
    $region27: #{tpu_custom_call.1} parent=1 // pred_check_branch
      %567 = sbr.rel (0) target = $region29
    $region28: #{tpu_custom_call.1} parent=1 // pred_region
      %568 = dma.done [#allocation4], 4096
    $region29: #{tpu_custom_call.1} parent=1 // pred_fallthru
      _
    %569 = vsyncpa [#allocation4], 1

</llo_original>
